<compile_context>
chip_gen: v7x
topology: tpu7x:2x2x1
jax: 0.10.0
libtpu: 0.0.40
codegen_flags: <defaults>
</compile_context>

<pallas_src>
import jax
import jax.numpy as jnp
from jax.experimental import pallas as pl
from jax.experimental.pallas import tpu as pltpu

LAMBDA_COORD = 1.0
LAMBDA_CONF_OBJ = 5.0
LAMBDA_CONF_NOOBJ = 0.5


# ------------------- Pallas: tiled objectness-BCE reduction ------------------

def _conf_bce_kernel(p_ref, m_ref, out_ref):
    """One (tile_rows, lane) slab of conf/mask -> accumulate weighted BCE sum."""
    @pl.when(pl.program_id(0) == 0)
    def _():
        out_ref[...] = jnp.zeros_like(out_ref)

    p = p_ref[...]
    m = m_ref[...]
    # PyTorch F.binary_cross_entropy semantics: per-element log clamped >= -100.
    log_p = jnp.maximum(jnp.log(p), -100.0)
    log_1mp = jnp.maximum(jnp.log(1.0 - p), -100.0)
    partial = (LAMBDA_CONF_OBJ * jnp.sum(-m * log_p)
               + LAMBDA_CONF_NOOBJ * jnp.sum(-(1.0 - m) * log_1mp))
    out_ref[...] = out_ref[...] + partial


def conf_bce_loss(conf, mask, *, lane=1024, max_tile_rows=256):
    """Weighted objectness BCE summed over all anchors.

    conf/mask are flattened, zero-padded (p=0, m=0 contributes exactly 0 to both
    BCE terms) and reshaped to a lane-dense (rows, lane) slab.  The grid tiles
    the row axis (tiles double-buffered by the BlockSpec pipeline); the scalar
    loss lives in the VMEM-resident (1, 1) output block across all steps and is
    written back to HBM only once.
    """
    total = int(conf.size)
    rows = (total + lane - 1) // lane
    num_tiles = max(1, (rows + max_tile_rows - 1) // max_tile_rows)
    tile_rows = (((rows + num_tiles - 1) // num_tiles) + 7) // 8 * 8   # (8,128)-aligned
    rows_padded = num_tiles * tile_rows
    pad = rows_padded * lane - total

    conf2d = jnp.pad(conf.reshape(-1), (0, pad)).reshape(rows_padded, lane)
    mask2d = jnp.pad(mask.reshape(-1), (0, pad)).reshape(rows_padded, lane)

    out = pl.pallas_call(
        _conf_bce_kernel,
        out_shape=jax.ShapeDtypeStruct((1, 1), jnp.float32),
        grid_spec=pltpu.PrefetchScalarGridSpec(
            num_scalar_prefetch=0,
            grid=(num_tiles,),
            in_specs=[pl.BlockSpec((tile_rows, lane), lambda i: (i, 0)),
                      pl.BlockSpec((tile_rows, lane), lambda i: (i, 0))],
            out_specs=pl.BlockSpec((1, 1), lambda i: (0, 0)),
        ),
        compiler_params=pltpu.CompilerParams(
            # reduction axis carries the accumulator -> "arbitrary".
            # TODO(synk): emit per-tile partial sums + "parallel" to shard the
            # sweep across v7x's two TensorCores.
            dimension_semantics=("arbitrary",),
            vmem_limit_bytes=32 * 1024 * 1024),
    )(conf2d, mask2d)
    return out[0, 0]


# ------------------------------- forward pass --------------------------------

def yolo_loss_forward(pred_x, coord_x, y_cls, y_coord, anchors, grid_sizes, inp_dim):
    B, N, D = pred_x.shape
    C = D - 5
    NS, AP, _ = anchors.shape           # num scales, anchors per scale
    GT = y_coord.shape[1]
    gs = grid_sizes.astype(jnp.float32)

    x, y, w, h = (y_coord[..., k] for k in range(4))          # each (B, GT)

    # candidate anchor indices per (image, gt box): the AP anchors at the gt
    # cell of every scale, flattened scale-major (matches the PyTorch loop).
    base = jnp.concatenate(
        [jnp.zeros((1,), jnp.int32),
         jnp.cumsum((grid_sizes.astype(jnp.int32) ** 2) * AP)[:-1].astype(jnp.int32)])
    cell = jnp.floor(y[..., None] * gs) * gs + jnp.floor(x[..., None] * gs)   # (B,GT,NS)
    start = base[None, None, :] + cell.astype(jnp.int32) * AP
    candis = (start[..., None] + jnp.arange(AP, dtype=jnp.int32)).reshape(B, GT, NS * AP)

    # corner-form boxes only for the gathered candidates (no full-N pass).
    cand_pred = jax.vmap(lambda pb, ci: pb[ci])(
        pred_x[..., :4], candis.reshape(B, GT * NS * AP))
    cand_pred = cand_pred.reshape(B, GT, NS * AP, 4)
    ccx, ccy, cw, ch = (cand_pred[..., k] for k in range(4))
    cb_x1 = ccx - cw * 0.5
    cb_y1 = ccy - ch * 0.5
    cb_x2 = ccx + cw * 0.5
    cb_y2 = ccy + ch * 0.5

    gx1 = inp_dim * (x - w / 2); gy1 = inp_dim * (y - h / 2)
    gx2 = inp_dim * (x + w / 2); gy2 = inp_dim * (y + h / 2)

    # TODO(synk): bbox_iou is undefined in the reference module; standard
    # corner-box IoU (continuous coordinates, no +1 pixel convention) is used.
    ix1 = jnp.maximum(gx1[..., None], cb_x1)
    iy1 = jnp.maximum(gy1[..., None], cb_y1)
    ix2 = jnp.minimum(gx2[..., None], cb_x2)
    iy2 = jnp.minimum(gy2[..., None], cb_y2)
    inter = jnp.maximum(ix2 - ix1, 0.0) * jnp.maximum(iy2 - iy1, 0.0)
    area_gt = (gx2 - gx1) * (gy2 - gy1)
    area_c = (cb_x2 - cb_x1) * (cb_y2 - cb_y1)
    iou = inter / (area_gt[..., None] + area_c - inter + 1e-9)
    train_idx = jnp.argmax(iou, axis=-1)                                      # (B, GT)
    obj_idx = jnp.take_along_axis(candis, train_idx[..., None], axis=-1)[..., 0]

    # candis is scale-major with AP anchors per scale -> scale = idx // AP,
    # anchor-in-scale = idx % AP.  (The reference uses len(anchors) == NS,
    # identical whenever NS == AP as in standard YOLO and this demo.)
    scale_idx = train_idx // AP
    anchor_idx = train_idx % AP
    anchor_wh = anchors[scale_idx, anchor_idx]                                # (B, GT, 2)
    g_sel = gs[scale_idx]                                                     # (B, GT)

    # inverse logistic, clamped so fractional parts near 1 don't produce NaN/Inf.
    def inv_logistic(z):
        z = jnp.clip(z, 1e-7, 1.0 - 1e-7)
        return jnp.log(z / (1.0 - z))

    tx = inv_logistic((x * g_sel) % 1.0 + 1e-5)
    ty = inv_logistic((y * g_sel) % 1.0 + 1e-5)
    tw = jnp.log(w * inp_dim / anchor_wh[..., 0])
    th = jnp.log(h * inp_dim / anchor_wh[..., 1])
    target_coord = jnp.stack([tx, ty, tw, th], axis=-1).reshape(B * GT, 4)

    batch_idx = jnp.repeat(jnp.arange(B), GT)
    flat_obj = obj_idx.reshape(-1)

    # --- tiny O(B*GT) per-object terms stay in plain JAX ---------------------
    coord_pred_obj = coord_x[batch_idx, flat_obj]                             # (B*GT, 4)
    coord_loss = LAMBDA_COORD * jnp.sum((coord_pred_obj - target_coord) ** 2)

    cls_pred_obj = pred_x[batch_idx, flat_obj, 5:]                            # (B*GT, C)
    cls_target = jax.nn.one_hot(y_cls.reshape(-1), C, dtype=jnp.float32)
    cls_loss = jnp.sum(-(cls_target * jnp.maximum(jnp.log(cls_pred_obj), -100.0)
                         + (1.0 - cls_target)
                         * jnp.maximum(jnp.log(1.0 - cls_pred_obj), -100.0)))

    # --- dominant O(B*N) objectness BCE: tiled Pallas reduction --------------
    conf = pred_x[:, :, 4]                                                    # (B, N) f32
    target_conf = jnp.zeros((B, N), jnp.float32).at[batch_idx, flat_obj].set(1.0)
    conf_loss = conf_bce_loss(conf, target_conf)

    return conf_loss + coord_loss + cls_loss


# ------------------------------------ demo -----------------------------------

if __name__ == "__main__":
    key = jax.random.PRNGKey(0)

    B = 2
    grid_sizes = jnp.array([4, 2, 1], dtype=jnp.int32)       # 3 scales
    anchors = jnp.array([[[3., 4.], [5., 6.], [7., 8.]],
                         [[9., 10.], [12., 14.], [16., 18.]],
                         [[20., 22.], [24., 26.], [28., 30.]]], dtype=jnp.float32)
    AP = anchors.shape[1]
    N = int(jnp.sum(grid_sizes ** 2)) * AP                    # 63 boxes / image
    C = 8
    inp_dim = 32.0
    GT = 2                                                    # GT boxes / image

    k1, k2, k3, k4, k5, k6, k7 = jax.random.split(key, 7)
    centers = jax.random.uniform(k1, (B, N, 2), minval=0.0, maxval=inp_dim)
    wh = jax.random.uniform(k2, (B, N, 2), minval=2.0, maxval=10.0)
    conf = jax.nn.sigmoid(jax.random.normal(k3, (B, N, 1)))
    cls_probs = jax.nn.sigmoid(jax.random.normal(k4, (B, N, C)))
    pred_x = jnp.concatenate([centers, wh, conf, cls_probs], axis=-1).astype(jnp.float32)

    coord_x = jax.random.normal(k5, (B, N, 4), dtype=jnp.float32)

    xy = jax.random.uniform(k6, (B, GT, 2), minval=0.15, maxval=0.85)
    box_wh = jax.random.uniform(k7, (B, GT, 2), minval=0.05, maxval=0.25)
    y_coord = jnp.concatenate([xy, box_wh], axis=-1).astype(jnp.float32)
    y_cls = jax.random.randint(jax.random.PRNGKey(42), (B, GT), 0, C)

    loss = yolo_loss_forward(pred_x, coord_x, y_cls, y_coord, anchors, grid_sizes, inp_dim)
    loss = jax.block_until_ready(loss)
    assert bool(jnp.isfinite(loss)), "loss is not finite"
    print("KERNEL_OK")
</pallas_src>

<mosaic_0001>
module attributes {stable_mosaic.version = 11 : i64} {
  func.func @_conf_bce_kernel(%arg0: i32, %arg1: memref<8x1024xf32, #tpu.memory_space<vmem>>, %arg2: memref<8x1024xf32, #tpu.memory_space<vmem>>, %arg3: memref<1x1xf32, #tpu.memory_space<vmem>>) attributes {dimension_semantics = [#tpu.dimension_semantics<arbitrary>], iteration_bounds = array<i64: 1>, scalar_prefetch = 0 : i64, scratch_operands = 0 : i64, tpu.core_type = #tpu.core_type<tc>, window_params = [{transform_indices = @transform_0, window_bounds = array<i64: 8, 1024>}, {transform_indices = @transform_1, window_bounds = array<i64: 8, 1024>}, {pipeline_mode = #tpu.pipeline_mode<synchronous>, transform_indices = @transform_2, window_bounds = array<i64: 1, 1>}]} {
    %c0_i32 = arith.constant 0 : i32
    %0 = arith.cmpi eq, %arg0, %c0_i32 : i32
    %1 = arith.extui %0 : i1 to i32
    %c0_i32_0 = arith.constant 0 : i32
    %2 = arith.cmpi ne, %1, %c0_i32_0 : i32
    scf.if %2 {
      %cst_17 = arith.constant 0.000000e+00 : f32
      %36 = vector.broadcast %cst_17 : f32 to vector<1x1xf32>
      %c0_18 = arith.constant 0 : index
      %c0_19 = arith.constant 0 : index
      %37 = vector.load %arg3[%c0_18, %c0_19] : memref<1x1xf32, #tpu.memory_space<vmem>>, vector<1x1xf32>
      tpu.vector_store %arg3[%c0_18, %c0_19], %36 {strides = array<i32>} : memref<1x1xf32, #tpu.memory_space<vmem>>, vector<1x1xf32>,
    } else {
    }
    %c0 = arith.constant 0 : index
    %c0_1 = arith.constant 0 : index
    %3 = vector.load %arg1[%c0, %c0_1] : memref<8x1024xf32, #tpu.memory_space<vmem>>, vector<8x1024xf32>
    %c0_2 = arith.constant 0 : index
    %c0_3 = arith.constant 0 : index
    %4 = vector.load %arg2[%c0_2, %c0_3] : memref<8x1024xf32, #tpu.memory_space<vmem>>, vector<8x1024xf32>
    %5 = math.log %3 : vector<8x1024xf32>
    %cst = arith.constant -1.000000e+02 : f32
    %6 = vector.broadcast %cst : f32 to vector<8x1024xf32>
    %7 = arith.maximumf %5, %6 : vector<8x1024xf32>
    %cst_4 = arith.constant 1.000000e+00 : f32
    %8 = vector.broadcast %cst_4 : f32 to vector<8x1024xf32>
    %9 = arith.subf %8, %3 : vector<8x1024xf32>
    %10 = math.log %9 : vector<8x1024xf32>
    %cst_5 = arith.constant -1.000000e+02 : f32
    %11 = vector.broadcast %cst_5 : f32 to vector<8x1024xf32>
    %12 = arith.maximumf %10, %11 : vector<8x1024xf32>
    %cst_6 = arith.constant 0.000000e+00 : f32
    %13 = vector.broadcast %cst_6 : f32 to vector<8x1024xf32>
    %14 = arith.subf %13, %4 : vector<8x1024xf32>
    %15 = arith.mulf %14, %7 : vector<8x1024xf32>
    %16 = vector.shape_cast %15 : vector<8x1024xf32> to vector<1x8x1024xf32>
    %cst_7 = arith.constant dense<0.000000e+00> : vector<1xf32>
    %17 = vector.multi_reduction <add>, %16, %cst_7 [1, 2] : vector<1x8x1024xf32> to vector<1xf32>
    %18 = vector.shape_cast %17 : vector<1xf32> to vector<1x1x1xf32>
    %19 = vector.extract %18[0, 0, 0] : f32 from vector<1x1x1xf32>
    %cst_8 = arith.constant 5.000000e+00 : f32
    %20 = arith.mulf %cst_8, %19 : f32
    %cst_9 = arith.constant 1.000000e+00 : f32
    %21 = vector.broadcast %cst_9 : f32 to vector<8x1024xf32>
    %22 = arith.subf %21, %4 : vector<8x1024xf32>
    %cst_10 = arith.constant 0.000000e+00 : f32
    %23 = vector.broadcast %cst_10 : f32 to vector<8x1024xf32>
    %24 = arith.subf %23, %22 : vector<8x1024xf32>
    %25 = arith.mulf %24, %12 : vector<8x1024xf32>
    %26 = vector.shape_cast %25 : vector<8x1024xf32> to vector<1x8x1024xf32>
    %cst_11 = arith.constant dense<0.000000e+00> : vector<1xf32>
    %27 = vector.multi_reduction <add>, %26, %cst_11 [1, 2] : vector<1x8x1024xf32> to vector<1xf32>
    %28 = vector.shape_cast %27 : vector<1xf32> to vector<1x1x1xf32>
    %29 = vector.extract %28[0, 0, 0] : f32 from vector<1x1x1xf32>
    %cst_12 = arith.constant 5.000000e-01 : f32
    %30 = arith.mulf %cst_12, %29 : f32
    %31 = arith.addf %20, %30 : f32
    %c0_13 = arith.constant 0 : index
    %c0_14 = arith.constant 0 : index
    %32 = vector.load %arg3[%c0_13, %c0_14] : memref<1x1xf32, #tpu.memory_space<vmem>>, vector<1x1xf32>
    %33 = vector.broadcast %31 : f32 to vector<1x1xf32>
    %34 = arith.addf %32, %33 : vector<1x1xf32>
    %c0_15 = arith.constant 0 : index
    %c0_16 = arith.constant 0 : index
    %35 = vector.load %arg3[%c0_15, %c0_16] : memref<1x1xf32, #tpu.memory_space<vmem>>, vector<1x1xf32>
    tpu.vector_store %arg3[%c0_15, %c0_16], %34 {strides = array<i32>} : memref<1x1xf32, #tpu.memory_space<vmem>>, vector<1x1xf32>,
    return
  }
  func.func @transform_0(%arg0: i32) -> (i32, i32) {
    %c0_i32 = arith.constant 0 : i32
    %c0_i32_0 = arith.constant 0 : i32
    return %arg0, %c0_i32 : i32, i32
  }
  func.func @transform_1(%arg0: i32) -> (i32, i32) {
    %c0_i32 = arith.constant 0 : i32
    %c0_i32_0 = arith.constant 0 : i32
    return %arg0, %c0_i32 : i32, i32
  }
  func.func @transform_2(%arg0: i32) -> (i32, i32) {
    %c0_i32 = arith.constant 0 : i32
    %c0_i32_0 = arith.constant 0 : i32
    %c0_i32_1 = arith.constant 0 : i32
    return %c0_i32, %c0_i32_0 : i32, i32
  }
}

</mosaic_0001>

<llo_original>
// kernel: tpu_custom_call.1
$region0: #{tpu_custom_call.1}
  #allocation0 [shape = 'u32[]', space=smem, size = 0x4, offset = 0x4, fixed_abs, tag = 'smem constant byte address 0x4 - core index']
  #allocation1 [shape = 'u32[144,128]{1,0:T(1,128)}', space=vmem, size = 0x12000, scoped, tag = 'internal scratch']
  %s0 = inlined_call_operand.hbm [shape: f32[8,1024], index: 0, kind: input, shape index: {}]
  %s1 = inlined_call_operand.hbm [shape: f32[8,1024], index: 1, kind: input, shape index: {}]
  %s2 = inlined_call_operand.hbm [shape: f32[1,1], index: 2, kind: output, shape index: {}]
  %s3 = sld [smem:[#allocation0]]
  $region30: #{tpu_custom_call.1} parent=0
    _
  %s5 = ssub.s32 1, %s3
  %s6 = scalar_select 0, %s5, %s3
  $region1: #{tpu_custom_call.1} parent=0
    #allocation2 [shape = 'u8[32768]{0}', space=vmem, size = 0x8000, scoped, tag = 'input window, operand 0, single buffered']
    #allocation3 [shape = 's32[1]{0}', space=sflag, size = 0x4, scoped, tag = 'scoped memory for tpu_custom_call.1']
    #allocation4 [shape = 's32[1]{0}', space=sflag, size = 0x4, scoped, tag = 'scoped memory for tpu_custom_call.1']
    #allocation5 [shape = 'u8[32768]{0}', space=vmem, size = 0x8000, scoped, tag = 'input window, operand 1, single buffered']
    #allocation6 [shape = 's32[1]{0}', space=sflag, size = 0x4, scoped, tag = 'scoped memory for tpu_custom_call.1']
    #allocation7 [shape = 'u8[512]{0}', space=vmem, size = 0x400, scoped, tag = 'output window, operand 0, single buffered']
    %7 = vsyncpa [#allocation3], 0
    %8 = vsyncpa [#allocation6], 0
    %9 = vsyncpa [#allocation4], 0
    // Predicated region
    $region2: #{tpu_custom_call.1} parent=1 // pred_check
      _
    $region3: #{tpu_custom_call.1} parent=1 // pred_check_branch
      %11 = sbr.rel (0) target = $region5
    $region4: #{tpu_custom_call.1} parent=1 // pred_region
      %s13 = ssub.s32 1024, 1024
      %14 = vsyncadd [#allocation3], %s13
      %s16 = sshll.u32 [#allocation2], 4
      %s17 = int_to_ptr.vmem [resolvable:$true] %s16
      %19 = dma.hbm_to_vmem [thread:$0]  %s0, 1024, %s17, [#allocation3]
    $region5: #{tpu_custom_call.1} parent=1 // pred_fallthru
      _
    // Predicated region
    $region6: #{tpu_custom_call.1} parent=1 // pred_check
      _
    $region7: #{tpu_custom_call.1} parent=1 // pred_check_branch
      %21 = sbr.rel (0) target = $region9
    $region8: #{tpu_custom_call.1} parent=1 // pred_region
      %s23 = ssub.s32 1024, 1024
      %24 = vsyncadd [#allocation6], %s23
      %s26 = sshll.u32 [#allocation5], 4
      %s27 = int_to_ptr.vmem [resolvable:$true] %s26
      %29 = dma.hbm_to_vmem [thread:$0]  %s1, 1024, %s27, [#allocation6]
    $region9: #{tpu_custom_call.1} parent=1 // pred_fallthru
      _
    // Predicated region
    $region10: #{tpu_custom_call.1} parent=1 // pred_check
      _
    $region11: #{tpu_custom_call.1} parent=1 // pred_check_branch
      %31 = sbr.rel (0) target = $region13
    $region12: #{tpu_custom_call.1} parent=1 // pred_region
      %32 = dma.done [#allocation3], 1024
    $region13: #{tpu_custom_call.1} parent=1 // pred_fallthru
      _
    // Predicated region
    $region14: #{tpu_custom_call.1} parent=1 // pred_check
      _
    $region15: #{tpu_custom_call.1} parent=1 // pred_check_branch
      %34 = sbr.rel (0) target = $region17
    $region16: #{tpu_custom_call.1} parent=1 // pred_region
      %35 = dma.done [#allocation6], 1024
    $region17: #{tpu_custom_call.1} parent=1 // pred_fallthru
      _
    %p36 = scmp.eq.s32.totalorder 0, 0
    // Predicated region
    $region18: #{tpu_custom_call.1} parent=1 // pred_check
      %p37 = pneg %p36
    $region19: #{tpu_custom_call.1} parent=1 // pred_check_branch
      %39 = sbr.rel (%p37) target = $region21
    $region20: #{tpu_custom_call.1} parent=1 // pred_region
      %vm40 = vcmask 0
      %41 = vst.msk [vmem:[#allocation7] sm:$0x1] %vm40, 0.0
    $region21: #{tpu_custom_call.1} parent=1 // pred_fallthru
      _
    %v42 = vld [vmem:[#allocation2] sm:$0xff]
    %v43 = vld [vmem:[#allocation2 + $0x8] sm:$0xff]
    %v44 = vld [vmem:[#allocation2 + $0x10] sm:$0xff]
    %v45 = vld [vmem:[#allocation2 + $0x18] sm:$0xff]
    %v46 = vld [vmem:[#allocation2 + $0x20] sm:$0xff]
    %v47 = vld [vmem:[#allocation2 + $0x28] sm:$0xff]
    %v48 = vld [vmem:[#allocation2 + $0x30] sm:$0xff]
    %v49 = vld [vmem:[#allocation2 + $0x38] sm:$0xff]
    %v50 = vld [vmem:[#allocation5] sm:$0xff]
    %v51 = vld [vmem:[#allocation5 + $0x8] sm:$0xff]
    %v52 = vld [vmem:[#allocation5 + $0x10] sm:$0xff]
    %v53 = vld [vmem:[#allocation5 + $0x18] sm:$0xff]
    %v54 = vld [vmem:[#allocation5 + $0x20] sm:$0xff]
    %v55 = vld [vmem:[#allocation5 + $0x28] sm:$0xff]
    %v56 = vld [vmem:[#allocation5 + $0x30] sm:$0xff]
    %v57 = vld [vmem:[#allocation5 + $0x38] sm:$0xff]
    %v58 = vlog2.pop %v42
    %v59 = vmul.f32 %v58, 0.6931472
    %v60 = vlog2.pop %v43
    %v61 = vmul.f32 %v60, 0.6931472
    %v62 = vlog2.pop %v44
    %v63 = vmul.f32 %v62, 0.6931472
    %v64 = vlog2.pop %v45
    %v65 = vmul.f32 %v64, 0.6931472
    %v66 = vlog2.pop %v46
    %v67 = vmul.f32 %v66, 0.6931472
    %v68 = vlog2.pop %v47
    %v69 = vmul.f32 %v68, 0.6931472
    %v70 = vlog2.pop %v48
    %v71 = vmul.f32 %v70, 0.6931472
    %v72 = vlog2.pop %v49
    %v73 = vmul.f32 %v72, 0.6931472
    %v74 = vmax.f32 %v59, -100.0
    %v75 = vmax.f32 %v61, -100.0
    %v76 = vmax.f32 %v63, -100.0
    %v77 = vmax.f32 %v65, -100.0
    %v78 = vmax.f32 %v67, -100.0
    %v79 = vmax.f32 %v69, -100.0
    %v80 = vmax.f32 %v71, -100.0
    %v81 = vmax.f32 %v73, -100.0
    %v82 = vsub.f32 1.0, %v42
    %v83 = vsub.f32 1.0, %v43
    %v84 = vsub.f32 1.0, %v44
    %v85 = vsub.f32 1.0, %v45
    %v86 = vsub.f32 1.0, %v46
    %v87 = vsub.f32 1.0, %v47
    %v88 = vsub.f32 1.0, %v48
    %v89 = vsub.f32 1.0, %v49
    %v90 = vlog2.pop %v82
    %v91 = vmul.f32 %v90, 0.6931472
    %v92 = vlog2.pop %v83
    %v93 = vmul.f32 %v92, 0.6931472
    %v94 = vlog2.pop %v84
    %v95 = vmul.f32 %v94, 0.6931472
    %v96 = vlog2.pop %v85
    %v97 = vmul.f32 %v96, 0.6931472
    %v98 = vlog2.pop %v86
    %v99 = vmul.f32 %v98, 0.6931472
    %v100 = vlog2.pop %v87
    %v101 = vmul.f32 %v100, 0.6931472
    %v102 = vlog2.pop %v88
    %v103 = vmul.f32 %v102, 0.6931472
    %v104 = vlog2.pop %v89
    %v105 = vmul.f32 %v104, 0.6931472
    %v106 = vmax.f32 %v91, -100.0
    %v107 = vmax.f32 %v93, -100.0
    %v108 = vmax.f32 %v95, -100.0
    %v109 = vmax.f32 %v97, -100.0
    %v110 = vmax.f32 %v99, -100.0
    %v111 = vmax.f32 %v101, -100.0
    %v112 = vmax.f32 %v103, -100.0
    %v113 = vmax.f32 %v105, -100.0
    %v114 = vsub.f32 0.0, %v50
    %v115 = vsub.f32 0.0, %v51
    %v116 = vsub.f32 0.0, %v52
    %v117 = vsub.f32 0.0, %v53
    %v118 = vsub.f32 0.0, %v54
    %v119 = vsub.f32 0.0, %v55
    %v120 = vsub.f32 0.0, %v56
    %v121 = vsub.f32 0.0, %v57
    %v122 = vmul.f32 %v114, %v74
    %v123 = vmul.f32 %v115, %v75
    %v124 = vmul.f32 %v116, %v76
    %v125 = vmul.f32 %v117, %v77
    %v126 = vmul.f32 %v118, %v78
    %v127 = vmul.f32 %v119, %v79
    %v128 = vmul.f32 %v120, %v80
    %v129 = vmul.f32 %v121, %v81
    %v130 = vadd.f32 %v122, %v123
    %v131 = vadd.f32 %v130, %v124
    %v132 = vadd.f32 %v131, %v125
    %v133 = vadd.f32 %v132, %v126
    %v134 = vadd.f32 %v133, %v127
    %v135 = vadd.f32 %v134, %v128
    %v136 = vadd.f32 %v135, %v129
    %137 = vadd.xlane.f32.xlu0 %v136
    %v138 = vpop.xlane.xlu0 %137
    %v139 = vrot.slane %v138, 4
    %v140 = vadd.f32 %v138, %v139
    %v141 = vrot.slane %v140, 2
    %v142 = vadd.f32 %v140, %v141
    %v143 = vrot.slane %v142, 1
    %v144 = vadd.f32 %v142, %v143
    %s145 = vtos %v144
    %s146 = smul.f32 %s145, 5.0
    %v147 = vsub.f32 1.0, %v50
    %v148 = vsub.f32 1.0, %v51
    %v149 = vsub.f32 1.0, %v52
    %v150 = vsub.f32 1.0, %v53
    %v151 = vsub.f32 1.0, %v54
    %v152 = vsub.f32 1.0, %v55
    %v153 = vsub.f32 1.0, %v56
    %v154 = vsub.f32 1.0, %v57
    %v155 = vsub.f32 0.0, %v147
    %v156 = vsub.f32 0.0, %v148
    %v157 = vsub.f32 0.0, %v149
    %v158 = vsub.f32 0.0, %v150
    %v159 = vsub.f32 0.0, %v151
    %v160 = vsub.f32 0.0, %v152
    %v161 = vsub.f32 0.0, %v153
    %v162 = vsub.f32 0.0, %v154
    %v163 = vmul.f32 %v155, %v106
    %v164 = vmul.f32 %v156, %v107
    %v165 = vmul.f32 %v157, %v108
    %v166 = vmul.f32 %v158, %v109
    %v167 = vmul.f32 %v159, %v110
    %v168 = vmul.f32 %v160, %v111
    %v169 = vmul.f32 %v161, %v112
    %v170 = vmul.f32 %v162, %v113
    %v171 = vadd.f32 %v163, %v164
    %v172 = vadd.f32 %v171, %v165
    %v173 = vadd.f32 %v172, %v166
    %v174 = vadd.f32 %v173, %v167
    %v175 = vadd.f32 %v174, %v168
    %v176 = vadd.f32 %v175, %v169
    %v177 = vadd.f32 %v176, %v170
    %178 = vadd.xlane.f32.xlu0 %v177
    %v179 = vpop.xlane.xlu0 %178
    %v180 = vrot.slane %v179, 4
    %v181 = vadd.f32 %v179, %v180
    %v182 = vrot.slane %v181, 2
    %v183 = vadd.f32 %v181, %v182
    %v184 = vrot.slane %v183, 1
    %v185 = vadd.f32 %v183, %v184
    %s186 = vtos %v185
    %s187 = smul.f32 %s186, 0.5
    %s188 = sadd.f32 %s146, %s187
    %v189 = vld [vmem:[#allocation7] sm:$0x1]
    %v190 = vstv %s188
    %v191 = vadd.f32 %v189, %v190
    %vm192 = vcmask 0
    %193 = vst.msk [vmem:[#allocation7] sm:$0x1] %vm192, %v191
    // Predicated region
    $region22: #{tpu_custom_call.1} parent=1 // pred_check
      _
    $region23: #{tpu_custom_call.1} parent=1 // pred_check_branch
      %195 = sbr.rel (0) target = $region25
    $region24: #{tpu_custom_call.1} parent=1 // pred_region
      %s197 = ssub.s32 16, 16
      %198 = vsyncadd [#allocation4], %s197
      %s200 = sshll.u32 [#allocation7], 4
      %s201 = int_to_ptr.vmem [resolvable:$true] %s200
      %203 = dma.vmem_to_hbm [thread:$0]  %s201, 16, %s2, [#allocation4]
    $region25: #{tpu_custom_call.1} parent=1 // pred_fallthru
      _
    // Predicated region
    $region26: #{tpu_custom_call.1} parent=1 // pred_check
      _
    $region27: #{tpu_custom_call.1} parent=1 // pred_check_branch
      %205 = sbr.rel (0) target = $region29
    $region28: #{tpu_custom_call.1} parent=1 // pred_region
      %206 = dma.done [#allocation4], 16
    $region29: #{tpu_custom_call.1} parent=1 // pred_fallthru
      _
    %207 = vsyncpa [#allocation3], 1
    %208 = vsyncpa [#allocation6], 1
    %209 = vsyncpa [#allocation4], 1

</llo_original>
